<compile_context>
chip_gen: v6e
topology: v6e:2x2x1
jax: 0.10.0
libtpu: 0.0.40
codegen_flags: <defaults>
</compile_context>

<pallas_src>
import functools

import jax
import jax.numpy as jnp
from jax.experimental import pallas as pl
from jax.experimental.pallas import tpu as pltpu

_LANE = 128
_SUBLANE = {1: 32, 2: 16, 4: 8, 8: 8}   # packed sublane multiple per itemsize


# ---------------------------------------------------------------------------
# Generation-aware budgets (conservative fallback = v7x-safe)
# ---------------------------------------------------------------------------
def _tpu_vmem_bytes():
    try:
        return int(pltpu.get_tpu_info().vmem_capacity_bytes)
    except Exception:
        return 64 << 20  # assume the tightest (v7x per-TC) budget

_VMEM_BYTES = _tpu_vmem_bytes()
_SMALL_VMEM = _VMEM_BYTES <= (64 << 20)            # v7x
_MAX_BLOCK_BYTES = (4 << 20) if _SMALL_VMEM else (8 << 20)
_VMEM_LIMIT_CAP = (40 << 20) if _SMALL_VMEM else (64 << 20)


# ---------------------------------------------------------------------------
# Kernels
# ---------------------------------------------------------------------------
def _residual_add_kernel(y_ref, x_ref, o_ref):
    # out = y + x, where y = fn(x) was computed outside (arbitrary fn).
    o_ref[...] = (y_ref[...] + x_ref[...]).astype(o_ref.dtype)


def _residual_fused_kernel(x_ref, o_ref, *, fn):
    # out = fn(x) + x with an elementwise fn fused in-kernel (one HBM pass).
    x = x_ref[...]
    o_ref[...] = (fn(x) + x).astype(o_ref.dtype)


# ---------------------------------------------------------------------------
# Layout: lane-dense (rows, width) slab, tiled along rows, avoiding padding
# ---------------------------------------------------------------------------
def _choose_layout(n, *, sizing_itemsize, min_itemsize,
                   max_block_bytes=_MAX_BLOCK_BYTES,
                   min_grid_steps=2, max_width=16 * _LANE):
    """Returns (width, rows, block_rows, padded_rows).

    Preference order:
      1. width | n and rows % sublane == 0  -> zero padding, tiled grid.
      2. width | n, rows small              -> single full-dim block, no pad.
      3. fallback                            -> width=512, pad the tail.
    """
    sub = _SUBLANE.get(min_itemsize, 8)

    width = None
    if n % _LANE == 0:
        for k in range(max_width // _LANE, 0, -1):          # prefer wide lanes
            w = k * _LANE
            if n % w == 0 and (n // w) % sub == 0:
                width = w
                break
        if width is None:
            for k in range(max_width // _LANE, 0, -1):
                w = k * _LANE
                if n % w == 0:
                    width = w
                    break
    if width is None:
        width = 4 * _LANE                                   # fallback: pad
    rows = pl.cdiv(n, width)

    max_rows = max(sub, (max_block_bytes // (width * sizing_itemsize)) // sub * sub)

    if rows % sub == 0:
        cap = min(max_rows, rows)
        # Guarantee >=2 grid steps when the tensor allows it (v7x: 2 TCs).
        if rows // cap < min_grid_steps and rows >= min_grid_steps * sub:
            cap = max(sub, ((rows // min_grid_steps) // sub) * sub)
        block_rows = sub
        for br in range(cap, sub - 1, -sub):                # largest divisor
            if rows % br == 0:
                block_rows = br
                break
        padded_rows = rows                                  # exact tiling
    elif rows <= max_rows:
        block_rows = rows                                   # full-dim block
        padded_rows = rows
    else:
        block_rows = min(max_rows, max(sub, ((rows // min_grid_steps) // sub) * sub))
        padded_rows = pl.cdiv(rows, block_rows) * block_rows

    return width, rows, block_rows, padded_rows


def _to_2d(flat, padded_rows, width, pad_value=0):
    n = flat.shape[0]
    padded = padded_rows * width
    if padded != n:
        flat = jnp.pad(flat, (0, padded - n), constant_values=pad_value)
    return flat.reshape(padded_rows, width)


def _run_elementwise(kernel, inputs_2d, out_dtype, block_rows, width, padded_rows):
    grid_steps = padded_rows // block_rows
    spec = pl.BlockSpec((block_rows, width), lambda i: (i, 0))

    out_itemsize = jnp.dtype(out_dtype).itemsize
    bytes_per_row = width * (out_itemsize +
                             sum(jnp.dtype(a.dtype).itemsize for a in inputs_2d))
    block_working_set = 2 * block_rows * bytes_per_row      # double-buffered
    vmem_limit = int(min(_VMEM_LIMIT_CAP,
                         max(4 << 20, block_working_set + block_working_set // 4)))

    n_elems = padded_rows * width
    cost = pl.CostEstimate(
        flops=int(n_elems),
        transcendentals=0,
        bytes_accessed=int(padded_rows * bytes_per_row),
    )
    return pl.pallas_call(
        kernel,
        out_shape=jax.ShapeDtypeStruct((padded_rows, width), out_dtype),
        grid_spec=pltpu.PrefetchScalarGridSpec(
            num_scalar_prefetch=0,
            grid=(grid_steps,),
            in_specs=[spec] * len(inputs_2d),
            out_specs=spec,
        ),
        compiler_params=pltpu.CompilerParams(
            dimension_semantics=("parallel",),
            vmem_limit_bytes=vmem_limit,
        ),
        cost_estimate=cost,
    )(*inputs_2d)


def _fn_out_dtype(fn, in_dtype):
    """Output dtype of fn(x)+x (torch-style promotion) + shape-preserving check."""
    try:
        probe = jax.ShapeDtypeStruct((8, _LANE), in_dtype)
        out = jax.eval_shape(fn, probe)
        if out.shape != probe.shape:
            raise ValueError(
                "fuse_elementwise=True requires a shape-preserving pointwise fn; "
                f"got output shape {out.shape} for input {probe.shape}")
        return jnp.result_type(out.dtype, in_dtype)
    except ValueError:
        raise
    except Exception:
        return jnp.dtype(in_dtype)


# ---------------------------------------------------------------------------
# Public wrappers
# ---------------------------------------------------------------------------
def pallas_residual_fused(x, fn):
    """out = fn(x) + x with elementwise fn applied inside the Pallas kernel."""
    orig_shape = x.shape
    n = x.size
    out_dtype = _fn_out_dtype(fn, x.dtype)
    itemsizes = (jnp.dtype(x.dtype).itemsize, jnp.dtype(out_dtype).itemsize)
    width, rows, block_rows, padded_rows = _choose_layout(
        n, sizing_itemsize=max(itemsizes), min_itemsize=min(itemsizes))
    # pad_value=1 so fns undefined at 0 (1/x, log) don't emit NaN/Inf in padding
    x2 = _to_2d(x.reshape(-1), padded_rows, width, pad_value=1)
    kernel = functools.partial(_residual_fused_kernel, fn=fn)
    out2 = _run_elementwise(kernel, [x2], out_dtype, block_rows, width, padded_rows)
    if padded_rows * width == n:
        return out2.reshape(orig_shape)                     # no slice needed
    return out2.reshape(-1)[:n].reshape(orig_shape)


def pallas_residual_add(y, x):
    """out = y + x (residual add) as a lane-dense tiled Pallas kernel."""
    assert y.shape == x.shape, (y.shape, x.shape)
    orig_shape = x.shape
    out_dtype = jnp.result_type(y.dtype, x.dtype)
    n = x.size
    itemsizes = (jnp.dtype(y.dtype).itemsize, jnp.dtype(x.dtype).itemsize,
                 jnp.dtype(out_dtype).itemsize)
    width, rows, block_rows, padded_rows = _choose_layout(
        n, sizing_itemsize=max(itemsizes), min_itemsize=min(itemsizes))
    y2 = _to_2d(y.reshape(-1), padded_rows, width)
    x2 = _to_2d(x.reshape(-1), padded_rows, width)
    out2 = _run_elementwise(
        _residual_add_kernel, [y2, x2], out_dtype, block_rows, width, padded_rows)
    if padded_rows * width == n:
        return out2.reshape(orig_shape)                     # no slice needed
    return out2.reshape(-1)[:n].reshape(orig_shape)


def residual(x, fn=None, *args, fuse_elementwise=None, add_in_pallas=True, **kwargs):
    """Residual.forward: fn(x, *args, **kwargs) + x.

    fn: plain JAX callable (default identity).
    fuse_elementwise=True -> fn is applied inside the Pallas kernel (it must be
      a shape-preserving pointwise jnp function); otherwise fn runs in plain
      JAX and the residual add runs in Pallas.
    add_in_pallas=False   -> non-fused path emits the add in plain JAX so XLA
      can fuse it into fn's epilogue (per perf review; saves one 3N-byte pass
      when fn is an ordinary XLA computation).
    """
    if fn is None:
        fn = lambda v: v
        fuse = True if fuse_elementwise is None else bool(fuse_elementwise)
    else:
        fuse = bool(fuse_elementwise)

    if fuse:
        return pallas_residual_fused(x, lambda v: fn(v, *args, **kwargs))
    y = fn(x, *args, **kwargs)
    if not add_in_pallas:
        return y + x
    return pallas_residual_add(y, x)


# ---------------------------------------------------------------------------
# Self-test
# ---------------------------------------------------------------------------
if __name__ == "__main__":
    key = jax.random.PRNGKey(0)
    B, C, H, W = 2, 4, 16, 16
    x = jax.random.normal(key, (B, C, H, W), dtype=jnp.float32)

    # 1) Residual(nn.Identity()):  out = x + x  (identity fused in-kernel)
    out_id = jax.block_until_ready(residual(x))
    assert out_id.shape == x.shape
    assert jnp.allclose(out_id, x + x, atol=1e-6, rtol=1e-6)

    # 2) Residual with a pointwise fn fused into the kernel: out = tanh(x) + x
    out_fused = jax.block_until_ready(residual(x, jnp.tanh, fuse_elementwise=True))
    assert jnp.allclose(out_fused, jnp.tanh(x) + x, atol=1e-5, rtol=1e-5)

    # 3) Arbitrary (non-fused) fn in plain JAX, residual add in Pallas.
    def some_block(v):
        return jnp.sin(v) * 0.5 + 0.25

    out_gen = jax.block_until_ready(residual(x, some_block, fuse_elementwise=False))
    assert jnp.allclose(out_gen, some_block(x) + x, atol=1e-5, rtol=1e-5)

    # 4) bf16 activations (diffusion-UNet style) + a ragged shape that forces
    #    the padding fallback, to exercise both layout paths.
    xb = jax.random.normal(key, (2, 7, 13, 5), dtype=jnp.bfloat16)
    out_bf = jax.block_until_ready(residual(xb, jnp.tanh, fuse_elementwise=True))
    assert out_bf.shape == xb.shape
    assert jnp.allclose(out_bf.astype(jnp.float32),
                        (jnp.tanh(xb) + xb).astype(jnp.float32),
                        atol=2e-2, rtol=2e-2)

    print("KERNEL_OK")
</pallas_src>

<mosaic_0001>
module attributes {stable_mosaic.version = 11 : i64} {
  func.func @_residual_fused_kernel(%arg0: i32, %arg1: memref<8x256xf32, #tpu.memory_space<vmem>>, %arg2: memref<8x256xf32, #tpu.memory_space<vmem>>) attributes {dimension_semantics = [#tpu.dimension_semantics<parallel>], iteration_bounds = array<i64: 1>, scalar_prefetch = 0 : i64, scratch_operands = 0 : i64, tpu.core_type = #tpu.core_type<tc>, window_params = [{transform_indices = @transform_0, window_bounds = array<i64: 8, 256>}, {transform_indices = @transform_1, window_bounds = array<i64: 8, 256>}]} {
    %c0 = arith.constant 0 : index
    %c0_0 = arith.constant 0 : index
    %0 = vector.load %arg1[%c0, %c0_0] : memref<8x256xf32, #tpu.memory_space<vmem>>, vector<8x256xf32>
    %1 = arith.addf %0, %0 : vector<8x256xf32>
    %c0_1 = arith.constant 0 : index
    %c0_2 = arith.constant 0 : index
    %2 = vector.load %arg2[%c0_1, %c0_2] : memref<8x256xf32, #tpu.memory_space<vmem>>, vector<8x256xf32>
    tpu.vector_store %arg2[%c0_1, %c0_2], %1 {strides = array<i32>} : memref<8x256xf32, #tpu.memory_space<vmem>>, vector<8x256xf32>,
    return
  }
  func.func @transform_0(%arg0: i32) -> (i32, i32) {
    %c0_i32 = arith.constant 0 : i32
    %c0_i32_0 = arith.constant 0 : i32
    return %arg0, %c0_i32 : i32, i32
  }
  func.func @transform_1(%arg0: i32) -> (i32, i32) {
    %c0_i32 = arith.constant 0 : i32
    %c0_i32_0 = arith.constant 0 : i32
    return %arg0, %c0_i32 : i32, i32
  }
}

</mosaic_0001>

<llo_original>
// kernel: tpu_custom_call.1
$region0: #{tpu_custom_call.1}
  #allocation0 [shape = 'u32[]', space=smem, size = 0x4, offset = 0x4, fixed_abs, tag = 'smem constant byte address 0x4 - core index']
  #allocation1 [shape = 'u32[144,128]{1,0:T(1,128)}', space=vmem, size = 0x12000, scoped, tag = 'internal scratch']
  %s0 = inlined_call_operand.hbm [shape: f32[8,256], index: 0, kind: input, shape index: {}]
  %s1 = inlined_call_operand.hbm [shape: f32[8,256], index: 1, kind: output, shape index: {}]
  %s2 = sld [smem:[#allocation0]]
  $region18: #{tpu_custom_call.1} parent=0
    _
  %s4 = ssub.s32 1, %s2
  %s5 = scalar_select 0, %s4, %s2
  $region1: #{tpu_custom_call.1} parent=0
    #allocation2 [shape = 'u8[8192]{0}', space=vmem, size = 0x2000, scoped, tag = 'input window, operand 0, single buffered']
    #allocation3 [shape = 's32[1]{0}', space=sflag, size = 0x4, scoped, tag = 'scoped memory for tpu_custom_call.1']
    #allocation4 [shape = 's32[1]{0}', space=sflag, size = 0x4, scoped, tag = 'scoped memory for tpu_custom_call.1']
    #allocation5 [shape = 'u8[8192]{0}', space=vmem, size = 0x2000, scoped, tag = 'output window, operand 0, single buffered']
    %6 = vsyncpa [#allocation3], 0
    %7 = vsyncpa [#allocation4], 0
    // Predicated region
    $region2: #{tpu_custom_call.1} parent=1 // pred_check
      _
    $region3: #{tpu_custom_call.1} parent=1 // pred_check_branch
      %9 = sbr.rel (0) target = $region5
    $region4: #{tpu_custom_call.1} parent=1 // pred_region
      %s11 = ssub.s32 256, 256
      %12 = vsyncadd [#allocation3], %s11
      %s14 = sshll.u32 [#allocation2], 4
      %s15 = int_to_ptr.vmem [resolvable:$true] %s14
      %17 = dma.hbm_to_vmem [thread:$0]  %s0, 256, %s15, [#allocation3]
    $region5: #{tpu_custom_call.1} parent=1 // pred_fallthru
      _
    // Predicated region
    $region6: #{tpu_custom_call.1} parent=1 // pred_check
      _
    $region7: #{tpu_custom_call.1} parent=1 // pred_check_branch
      %19 = sbr.rel (0) target = $region9
    $region8: #{tpu_custom_call.1} parent=1 // pred_region
      %20 = dma.done [#allocation3], 256
    $region9: #{tpu_custom_call.1} parent=1 // pred_fallthru
      _
    %v21 = vld [vmem:[#allocation2] sm:$0xff]
    %v22 = vld [vmem:[#allocation2 + $0x8] sm:$0xff]
    %v23 = vadd.f32 %v21, %v21
    %v24 = vadd.f32 %v22, %v22
    %25 = vst [vmem:[#allocation5] sm:$0xff] %v23
    %26 = vst [vmem:[#allocation5 + $0x8] sm:$0xff] %v24
    // Predicated region
    $region10: #{tpu_custom_call.1} parent=1 // pred_check
      _
    $region11: #{tpu_custom_call.1} parent=1 // pred_check_branch
      %28 = sbr.rel (0) target = $region13
    $region12: #{tpu_custom_call.1} parent=1 // pred_region
      %s30 = ssub.s32 256, 256
      %31 = vsyncadd [#allocation4], %s30
      %s33 = sshll.u32 [#allocation5], 4
      %s34 = int_to_ptr.vmem [resolvable:$true] %s33
      %36 = dma.vmem_to_hbm [thread:$0]  %s34, 256, %s1, [#allocation4]
    $region13: #{tpu_custom_call.1} parent=1 // pred_fallthru
      _
    // Predicated region
    $region14: #{tpu_custom_call.1} parent=1 // pred_check
      _
    $region15: #{tpu_custom_call.1} parent=1 // pred_check_branch
      %38 = sbr.rel (0) target = $region17
    $region16: #{tpu_custom_call.1} parent=1 // pred_region
      %39 = dma.done [#allocation4], 256
    $region17: #{tpu_custom_call.1} parent=1 // pred_fallthru
      _
    %40 = vsyncpa [#allocation3], 1
    %41 = vsyncpa [#allocation4], 1

</llo_original>
